<compile_context>
chip_gen: v6e
topology: v6e:2x2x1
jax: 0.10.0
libtpu: 0.0.40
codegen_flags: <defaults>
</compile_context>

<pallas_src>
import jax
import jax.numpy as jnp
from jax.experimental import pallas as pl
from jax.experimental.pallas import tpu as pltpu


def _round_up(x, m):
    return (x + m - 1) // m * m


def _vmem_capacity_bytes():
    """Physical VMEM per TensorCore; conservative (v7x) fallback if unknown."""
    try:
        info = pltpu.get_tpu_info()
        for attr in ("vmem_capacity_bytes", "vmem_size_bytes", "vmem_bytes"):
            v = getattr(info, attr, None)
            if v:
                return int(v)
    except Exception:
        pass
    return 64 * 2**20


def _plan_dim(size, align, cap, min_tiles=1):
    """Split `size` into `nt` equal tiles of `tile` (multiple of `align`).

    Padding waste is bounded by nt * align (a few percent), unlike padding the
    whole dim up to a multiple of a fixed large tile.
    Returns (tile, nt, padded_size == nt * tile).
    """
    aligned = _round_up(size, align)
    nt = max(min_tiles, pl.cdiv(aligned, cap))
    nt = min(nt, aligned // align)  # never make a tile smaller than `align`
    tile = _round_up(pl.cdiv(aligned, nt), align)
    return tile, nt, nt * tile


# ----------------------------------------------------------------------------
# Kernels.  Weight tiles are [tk, tn] (pre-transposed at init), x tiles are
# [tm, tk]; all matmuls accumulate in f32 on the MXU.
# ----------------------------------------------------------------------------
def _single_bias_kernel(x_ref, w_ref, b_ref, o_ref):
    acc = jnp.dot(x_ref[...], w_ref[...], preferred_element_type=jnp.float32)
    o_ref[...] = (acc + b_ref[...]).astype(o_ref.dtype)


def _single_nobias_kernel(x_ref, w_ref, o_ref):
    o_ref[...] = jnp.dot(
        x_ref[...], w_ref[...], preferred_element_type=jnp.float32
    ).astype(o_ref.dtype)


def _ktiled_inplace_bias_kernel(x_ref, w_ref, b_ref, o_ref):
    """f32 output: accumulate directly into o_ref; bias folded into k == 0."""
    k = pl.program_id(2)
    part = jnp.dot(x_ref[...], w_ref[...], preferred_element_type=jnp.float32)

    @pl.when(k == 0)
    def _():
        o_ref[...] = part + b_ref[...]

    @pl.when(k > 0)
    def _():
        o_ref[...] += part


def _ktiled_inplace_nobias_kernel(x_ref, w_ref, o_ref):
    k = pl.program_id(2)
    part = jnp.dot(x_ref[...], w_ref[...], preferred_element_type=jnp.float32)

    @pl.when(k == 0)
    def _():
        o_ref[...] = part

    @pl.when(k > 0)
    def _():
        o_ref[...] += part


def _ktiled_scratch_bias_kernel(x_ref, w_ref, b_ref, o_ref, acc_ref):
    """Low-precision output: f32 VMEM accumulator, cast once in the epilogue."""
    k = pl.program_id(2)
    part = jnp.dot(x_ref[...], w_ref[...], preferred_element_type=jnp.float32)

    @pl.when(k == 0)
    def _():
        acc_ref[...] = part + b_ref[...]

    @pl.when(k > 0)
    def _():
        acc_ref[...] += part

    @pl.when(k == pl.num_programs(2) - 1)
    def _():
        o_ref[...] = acc_ref[...].astype(o_ref.dtype)


def _ktiled_scratch_nobias_kernel(x_ref, w_ref, o_ref, acc_ref):
    k = pl.program_id(2)
    part = jnp.dot(x_ref[...], w_ref[...], preferred_element_type=jnp.float32)

    @pl.when(k == 0)
    def _():
        acc_ref[...] = part

    @pl.when(k > 0)
    def _():
        acc_ref[...] += part

    @pl.when(k == pl.num_programs(2) - 1)
    def _():
        o_ref[...] = acc_ref[...].astype(o_ref.dtype)


# ----------------------------------------------------------------------------
# Module-style wrapper: weight layout decided once at construction.
# ----------------------------------------------------------------------------
class PallasLinear:
    """y = x @ W.T + b with the weight given PyTorch-style as [N, K]."""

    def __init__(self, weight, bias=None, *, tn_cap=512, tk_cap=None):
        N, K = weight.shape
        self.N, self.K = int(N), int(K)
        self.dtype = weight.dtype
        self._vmem_cap = _vmem_capacity_bytes()

        if tk_cap is None:
            # Whole-K fast path for as many shapes as possible; bigger tiles
            # on 128-MiB-VMEM chips (v5e/v6e), tighter on v7x (64 MiB).
            tk_cap = 4096 if self._vmem_cap >= 96 * 2**20 else 2048

        # >= 2 N-tiles whenever possible so both v7x TensorCores get work on
        # the parallel grid axes (harmless on single-TC v5e/v6e).
        self.tn, self.nj, self.Np = _plan_dim(
            self.N, 128, tn_cap, min_tiles=2 if self.N >= 256 else 1
        )
        self.tk, self.nk, self.Kp = _plan_dim(self.K, 128, tk_cap)

        # One-time weight prep: pad ragged edges (exact for the contraction)
        # and transpose to [Kp, Np] so the kernel uses a standard [tk, tn] tile.
        wp = weight
        if self.Np != self.N or self.Kp != self.K:
            wp = jnp.pad(weight, ((0, self.Np - self.N), (0, self.Kp - self.K)))
        self.w_kn = jnp.asarray(wp.T)  # [Kp, Np]

        if bias is not None:
            bp = bias if self.Np == self.N else jnp.pad(bias, (0, self.Np - self.N))
            self.b2d = bp.reshape(1, self.Np).astype(jnp.float32)
        else:
            self.b2d = None

    def __call__(self, x):
        assert x.ndim == 2 and x.shape[1] == self.K, x.shape
        if x.dtype != self.dtype:
            x = x.astype(self.dtype)
        M = x.shape[0]
        out_dtype = x.dtype

        tm_cap = 512 if M >= 512 else 256
        tm, ni, Mp = _plan_dim(M, 8, tm_cap)

        # Only the (small) activation is padded per call; weight was prepared
        # once at construction.
        if Mp != M or self.Kp != self.K:
            x = jnp.pad(x, ((0, Mp - M), (0, self.Kp - self.K)))

        tn, nj, Np = self.tn, self.nj, self.Np
        tk, nk, Kp = self.tk, self.nk, self.Kp

        bx = jnp.dtype(x.dtype).itemsize
        bw = jnp.dtype(self.w_kn.dtype).itemsize
        bo = jnp.dtype(out_dtype).itemsize
        has_bias = self.b2d is not None
        use_scratch = nk > 1 and out_dtype != jnp.float32

        # Double-buffered tiles (+ bias + optional f32 accumulator).
        vmem_need = (
            2 * (tm * tk * bx + tk * tn * bw + tm * tn * bo)
            + (2 * tn * 4 if has_bias else 0)
            + (tm * tn * 4 if use_scratch else 0)
        )
        vmem_limit = int(
            min(max(int(1.5 * vmem_need), 32 * 2**20), int(0.75 * self._vmem_cap))
        )
        vmem_limit = max(vmem_limit, vmem_need + (4 << 20))

        cost = pl.CostEstimate(
            flops=2 * Mp * Np * Kp,
            transcendentals=0,
            bytes_accessed=(
                bx * Mp * Kp                # activations
                + bw * Kp * Np * ni         # weight re-streamed once per M tile
                + bo * Mp * Np              # output
                + (4 * Np if has_bias else 0)
            ),
        )

        bias_args = (self.b2d,) if has_bias else ()

        if nk == 1:
            # Whole-K fast path: one MXU pass per output tile, no revisit.
            kernel = _single_bias_kernel if has_bias else _single_nobias_kernel
            in_specs = [
                pl.BlockSpec((tm, Kp), lambda i, j: (i, 0)),
                pl.BlockSpec((Kp, tn), lambda i, j: (0, j)),
            ]
            if has_bias:
                in_specs.append(pl.BlockSpec((1, tn), lambda i, j: (0, j)))
            out = pl.pallas_call(
                kernel,
                out_shape=jax.ShapeDtypeStruct((Mp, Np), out_dtype),
                grid_spec=pltpu.PrefetchScalarGridSpec(
                    num_scalar_prefetch=0,
                    grid=(ni, nj),
                    in_specs=in_specs,
                    out_specs=pl.BlockSpec((tm, tn), lambda i, j: (i, j)),
                ),
                compiler_params=pltpu.CompilerParams(
                    dimension_semantics=("parallel", "parallel"),
                    vmem_limit_bytes=vmem_limit,
                ),
                cost_estimate=cost,
            )(x, self.w_kn, *bias_args)
        else:
            if out_dtype == jnp.float32:
                kernel = (
                    _ktiled_inplace_bias_kernel
                    if has_bias
                    else _ktiled_inplace_nobias_kernel
                )
                scratch = []
            else:
                kernel = (
                    _ktiled_scratch_bias_kernel
                    if has_bias
                    else _ktiled_scratch_nobias_kernel
                )
                scratch = [pltpu.VMEM((tm, tn), jnp.float32)]
            in_specs = [
                pl.BlockSpec((tm, tk), lambda i, j, k: (i, k)),
                pl.BlockSpec((tk, tn), lambda i, j, k: (k, j)),
            ]
            if has_bias:
                in_specs.append(pl.BlockSpec((1, tn), lambda i, j, k: (0, j)))
            out = pl.pallas_call(
                kernel,
                out_shape=jax.ShapeDtypeStruct((Mp, Np), out_dtype),
                grid_spec=pltpu.PrefetchScalarGridSpec(
                    num_scalar_prefetch=0,
                    grid=(ni, nj, nk),
                    in_specs=in_specs,
                    out_specs=pl.BlockSpec((tm, tn), lambda i, j, k: (i, j)),
                    scratch_shapes=scratch,
                ),
                compiler_params=pltpu.CompilerParams(
                    dimension_semantics=("parallel", "parallel", "arbitrary"),
                    vmem_limit_bytes=vmem_limit,
                ),
                cost_estimate=cost,
            )(x, self.w_kn, *bias_args)

        if Mp != M or Np != self.N:
            out = out[:M, : self.N]
        return out


def linear_forward(x, weight, bias=None, **kwargs):
    """One-shot functional form (prefers the PallasLinear class for reuse)."""
    return PallasLinear(weight, bias, **kwargs)(x)


if __name__ == "__main__":
    # Shapes consistent with nn.Linear(input_size=512, output_size=1000).
    # N=1000 exercises the ragged-N (128-aligned) padding + 2 N-tiles; K=512
    # hits the whole-K fast path.
    batch = 16
    input_size = 512
    output_size = 1000

    key = jax.random.PRNGKey(0)
    kx, kw, kb = jax.random.split(key, 3)

    x = jax.random.normal(kx, (batch, input_size), dtype=jnp.float32)
    bound = 1.0 / (input_size ** 0.5)
    weight = jax.random.uniform(
        kw, (output_size, input_size), minval=-bound, maxval=bound, dtype=jnp.float32
    )
    bias = jax.random.uniform(
        kb, (output_size,), minval=-bound, maxval=bound, dtype=jnp.float32
    )

    # Module-style usage: weight is padded/transposed once at construction.
    lin = PallasLinear(weight, bias)
    y = jax.block_until_ready(lin(x))
    y_ref = x @ weight.T + bias
    assert y.shape == (batch, output_size)
    assert jnp.allclose(y, y_ref, atol=1e-3, rtol=1e-3), float(
        jnp.max(jnp.abs(y - y_ref))
    )

    # K-tiled reduction path (force tk_cap=1024), f32 in-place accumulation.
    K2 = 2048
    x2 = jax.random.normal(kx, (batch, K2), dtype=jnp.float32)
    w2 = jax.random.uniform(
        kw, (output_size, K2), minval=-bound, maxval=bound, dtype=jnp.float32
    )
    lin2 = PallasLinear(w2, bias, tk_cap=1024)
    y2 = jax.block_until_ready(lin2(x2))
    y2_ref = x2 @ w2.T + bias
    assert jnp.allclose(y2, y2_ref, atol=1e-3, rtol=1e-3), float(
        jnp.max(jnp.abs(y2 - y2_ref))
    )

    # K-tiled path with a low-precision (bf16) output: f32 scratch accumulator.
    lin3 = PallasLinear(w2.astype(jnp.bfloat16), bias, tk_cap=1024)
    y3 = jax.block_until_ready(lin3(x2.astype(jnp.bfloat16)))
    err = float(jnp.max(jnp.abs(y3.astype(jnp.float32) - y2_ref)))
    assert err < 0.1, err

    # Bias-free variant (no zero-bias materialization or in-kernel add).
    lin4 = PallasLinear(weight, None)
    y4 = jax.block_until_ready(lin4(x))
    assert jnp.allclose(y4, x @ weight.T, atol=1e-3, rtol=1e-3)

    print("KERNEL_OK")
</pallas_src>

<mosaic_0001>
module attributes {stable_mosaic.version = 11 : i64} {
  func.func @_single_bias_kernel(%arg0: i32, %arg1: i32, %arg2: memref<16x512xf32, #tpu.memory_space<vmem>>, %arg3: memref<512x512xf32, #tpu.memory_space<vmem>>, %arg4: memref<1x512xf32, #tpu.memory_space<vmem>>, %arg5: memref<16x512xf32, #tpu.memory_space<vmem>>) attributes {dimension_semantics = [#tpu.dimension_semantics<parallel>, #tpu.dimension_semantics<parallel>], iteration_bounds = array<i64: 1, 2>, scalar_prefetch = 0 : i64, scratch_operands = 0 : i64, tpu.core_type = #tpu.core_type<tc>, window_params = [{transform_indices = @transform_0, window_bounds = array<i64: 16, 512>}, {transform_indices = @transform_1, window_bounds = array<i64: 512, 512>}, {transform_indices = @transform_2, window_bounds = array<i64: 1, 512>}, {transform_indices = @transform_3, window_bounds = array<i64: 16, 512>}]} {
    %c0 = arith.constant 0 : index
    %c0_0 = arith.constant 0 : index
    %0 = vector.load %arg2[%c0, %c0_0] : memref<16x512xf32, #tpu.memory_space<vmem>>, vector<16x512xf32>
    %c0_1 = arith.constant 0 : index
    %c0_2 = arith.constant 0 : index
    %1 = vector.load %arg3[%c0_1, %c0_2] : memref<512x512xf32, #tpu.memory_space<vmem>>, vector<512x512xf32>
    %cst = arith.constant dense<0.000000e+00> : vector<16x512xf32>
    %2 = tpu.matmul %0, %1, %cst {dimension_numbers = #tpu.dot_dimension_numbers<[1], [0], [0], [1], [0, 0, 1, 1], [], []>} : vector<16x512xf32>, vector<512x512xf32>, vector<16x512xf32> -> vector<16x512xf32>
    %c0_3 = arith.constant 0 : index
    %c0_4 = arith.constant 0 : index
    %3 = vector.load %arg4[%c0_3, %c0_4] : memref<1x512xf32, #tpu.memory_space<vmem>>, vector<1x512xf32>
    %4 = vector.broadcast %3 : vector<1x512xf32> to vector<16x512xf32>
    %5 = arith.addf %2, %4 : vector<16x512xf32>
    %c0_5 = arith.constant 0 : index
    %c0_6 = arith.constant 0 : index
    %6 = vector.load %arg5[%c0_5, %c0_6] : memref<16x512xf32, #tpu.memory_space<vmem>>, vector<16x512xf32>
    tpu.vector_store %arg5[%c0_5, %c0_6], %5 {strides = array<i32>} : memref<16x512xf32, #tpu.memory_space<vmem>>, vector<16x512xf32>,
    return
  }
  func.func @transform_0(%arg0: i32, %arg1: i32) -> (i32, i32) {
    %c0_i32 = arith.constant 0 : i32
    %c0_i32_0 = arith.constant 0 : i32
    return %arg0, %c0_i32 : i32, i32
  }
  func.func @transform_1(%arg0: i32, %arg1: i32) -> (i32, i32) {
    %c0_i32 = arith.constant 0 : i32
    %c0_i32_0 = arith.constant 0 : i32
    return %c0_i32, %arg1 : i32, i32
  }
  func.func @transform_2(%arg0: i32, %arg1: i32) -> (i32, i32) {
    %c0_i32 = arith.constant 0 : i32
    %c0_i32_0 = arith.constant 0 : i32
    return %c0_i32, %arg1 : i32, i32
  }
  func.func @transform_3(%arg0: i32, %arg1: i32) -> (i32, i32) {
    %c0_i32 = arith.constant 0 : i32
    return %arg0, %arg1 : i32, i32
  }
}

</mosaic_0001>

<llo_original>
// kernel: tpu_custom_call.1
$region0: #{tpu_custom_call.1}
  #allocation0 [shape = 'u32[]', space=smem, size = 0x4, offset = 0x4, fixed_abs, tag = 'smem constant byte address 0x4 - core index']
  #allocation1 [shape = 'u32[144,128]{1,0:T(1,128)}', space=vmem, size = 0x12000, scoped, tag = 'internal scratch']
  %s0 = inlined_call_operand.hbm [shape: f32[16,512], index: 0, kind: input, shape index: {}]
  %s1 = inlined_call_operand.hbm [shape: f32[512,1024], index: 1, kind: input, shape index: {}]
  %s2 = inlined_call_operand.hbm [shape: f32[1,1024], index: 2, kind: input, shape index: {}]
  %s3 = inlined_call_operand.hbm [shape: f32[16,1024], index: 3, kind: output, shape index: {}]
  %s4 = sld [smem:[#allocation0]]
  $region57: #{tpu_custom_call.1} parent=0
    _
  %s6 = ssub.s32 1, %s4
  %s7 = scalar_select 0, %s6, %s4
  $region1: #{tpu_custom_call.1} parent=0
    #allocation2 [shape = 'u8[32768]{0}', space=vmem, size = 0x8000, scoped, tag = 'input window, operand 0, single buffered']
    #allocation3 [shape = 's32[2]{0}', space=sflag, size = 0x8, scoped, tag = 'scoped memory for tpu_custom_call.1']
    #allocation4 [shape = 's32[2]{0}', space=sflag, size = 0x8, scoped, tag = 'scoped memory for tpu_custom_call.1']
    #allocation5 [shape = 'u8[2097152]{0}', space=vmem, size = 0x200000, scoped, tag = 'input window, operand 1']
    #allocation6 [shape = 's32[2]{0}', space=sflag, size = 0x8, scoped, tag = 'scoped memory for tpu_custom_call.1']
    #allocation7 [shape = 'u8[4096]{0}', space=vmem, size = 0x1000, scoped, tag = 'input window, operand 2']
    #allocation8 [shape = 'u8[65536]{0}', space=vmem, size = 0x10000, scoped, tag = 'output window, operand 0']
    %8 = vsyncpa [#allocation3], 0
    %9 = vsyncpa [#allocation6], 0
    %s10 = scalar_lea.sflag [#allocation6], 1
    %11 = vsyncpa %s10, 0
    %12 = vsyncpa [#allocation4], 0
    %s13 = scalar_lea.sflag [#allocation4], 1
    %14 = vsyncpa %s13, 0
    loop: start=0, step=1, limit=4
    $region2: #{tpu_custom_call.1} parent=1 // loop_pre_header
      _
    $region3: #{tpu_custom_call.1} parent=1 // loop_header
      %s16 = sphi 0, %s20
      %p17 = scmp.ge.s32.totalorder %s16, 4
      %s23 = sphi 0, %s35
      %s24 = sphi 0, %s31
      %s25 = sphi 0, %s23
      %s26 = sphi 0, %s24
      %s27 = sphi 0, %s25
      %s28 = sphi 0, %s26
      %s38 = sphi 0, %s40
      %s41 = sphi 0, %s38
      %s42 = sphi 0, %s41
      %s58 = sphi 0, %s42
      %s64 = sphi 0, %s66
      %s67 = sphi 0, %s64
      %s68 = sphi 0, %s67
      %s84 = sphi 0, %s68
      %s90 = sphi 0, %s92
      %s93 = sphi 0, %s90
      %s94 = sphi 0, %s93
      %s110 = sphi 0, %s94
      %s118 = sphi 0, %s120
      %s121 = sphi 0, %s118
      %s122 = sphi 0, %s121
      %s138 = sphi 0, %s122
    $region4: #{tpu_custom_call.1} parent=1 // loop_header_branch
      %19 = sbr.rel (%p17) target = $region8
    $region5: #{tpu_custom_call.1} parent=1 // loop_body
      %s21 = ssub.s32 %s16, 1
      %s22 = ssub.s32 %s16, 2
      %s29 = sadd.s32 1, %s24
      %p30 = scmp.ge.s32.totalorder %s29, 2
      %s31 = scalar_select %p30, 0, %s29
      %s32 = sadd.s32 1, %s23
      %s33 = scalar_select %p30, %s32, %s23
      %p34 = scmp.ge.s32.totalorder %s33, 1
      %s35 = scalar_select %p34, 0, %s33
      %s36 = ssub.s32 %s23, %s35
      %p37 = scmp.eq.s32.totalorder %s36, 0
      %s39 = sadd.s32 %s38, 1
      %s40 = scalar_select %p37, %s38, %s39
      %p43 = pneg %p37
      %p44 = scmp.eq.s32.totalorder %s16, 1
      %p45 = por %p43, %p44
      %p46 = scmp.ne.s32.totalorder %s38, %s41
      %p47 = scmp.eq.s32.totalorder %s16, 0
      %p48 = por %p46, %p47
      %p49 = scmp.ne.s32.totalorder %s38, %s41
      %p50 = scmp.eq.s32.totalorder %s21, 1
      %p51 = por %p49, %p50
      %p52 = scmp.ne.s32.totalorder %s41, %s42
      %p53 = scmp.eq.s32.totalorder %s21, 0
      %p54 = por %p52, %p53
      %p55 = scmp.ne.s32.totalorder %s41, %s42
      %p56 = scmp.eq.s32.totalorder %s22, 1
      %p57 = por %p55, %p56
      %p59 = scmp.ne.s32.totalorder %s42, %s58
      %p60 = scmp.eq.s32.totalorder %s22, 0
      %p61 = por %p59, %p60
      %s62 = ssub.s32 %s24, %s31
      %p63 = scmp.eq.s32.totalorder %s62, 0
      %s65 = sadd.s32 %s64, 1
      %s66 = scalar_select %p63, %s64, %s65
      %p69 = pneg %p63
      %p70 = scmp.eq.s32.totalorder %s16, 1
      %p71 = por %p69, %p70
      %p72 = scmp.ne.s32.totalorder %s64, %s67
      %p73 = scmp.eq.s32.totalorder %s16, 0
      %p74 = por %p72, %p73
      %p75 = scmp.ne.s32.totalorder %s64, %s67
      %p76 = scmp.eq.s32.totalorder %s21, 1
      %p77 = por %p75, %p76
      %p78 = scmp.ne.s32.totalorder %s67, %s68
      %p79 = scmp.eq.s32.totalorder %s21, 0
      %p80 = por %p78, %p79
      %p81 = scmp.ne.s32.totalorder %s67, %s68
      %p82 = scmp.eq.s32.totalorder %s22, 1
      %p83 = por %p81, %p82
      %p85 = scmp.ne.s32.totalorder %s68, %s84
      %p86 = scmp.eq.s32.totalorder %s22, 0
      %p87 = por %p85, %p86
      %s88 = ssub.s32 %s24, %s31
      %p89 = scmp.eq.s32.totalorder %s88, 0
      %s91 = sadd.s32 %s90, 1
      %s92 = scalar_select %p89, %s90, %s91
      %p95 = pneg %p89
      %p96 = scmp.eq.s32.totalorder %s16, 1
      %p97 = por %p95, %p96
      %p98 = scmp.ne.s32.totalorder %s90, %s93
      %p99 = scmp.eq.s32.totalorder %s16, 0
      %p100 = por %p98, %p99
      %p101 = scmp.ne.s32.totalorder %s90, %s93
      %p102 = scmp.eq.s32.totalorder %s21, 1
      %p103 = por %p101, %p102
      %p104 = scmp.ne.s32.totalorder %s93, %s94
      %p105 = scmp.eq.s32.totalorder %s21, 0
      %p106 = por %p104, %p105
      %p107 = scmp.ne.s32.totalorder %s93, %s94
      %p108 = scmp.eq.s32.totalorder %s22, 1
      %p109 = por %p107, %p108
      %p111 = scmp.ne.s32.totalorder %s94, %s110
      %p112 = scmp.eq.s32.totalorder %s22, 0
      %p113 = por %p111, %p112
      %s114 = ssub.s32 %s23, %s35
      %s115 = ssub.s32 %s24, %s31
      %s116 = sor.u32 %s114, %s115
      %p117 = scmp.eq.s32.totalorder %s116, 0
      %s119 = sadd.s32 %s118, 1
      %s120 = scalar_select %p117, %s118, %s119
      %p123 = pneg %p117
      %p124 = scmp.eq.s32.totalorder %s16, 1
      %p125 = por %p123, %p124
      %p126 = scmp.ne.s32.totalorder %s118, %s121
      %p127 = scmp.eq.s32.totalorder %s16, 0
      %p128 = por %p126, %p127
      %p129 = scmp.ne.s32.totalorder %s118, %s121
      %p130 = scmp.eq.s32.totalorder %s21, 1
      %p131 = por %p129, %p130
      %p132 = scmp.ne.s32.totalorder %s121, %s122
      %p133 = scmp.eq.s32.totalorder %s21, 0
      %p134 = por %p132, %p133
      %p135 = scmp.ne.s32.totalorder %s121, %s122
      %p136 = scmp.eq.s32.totalorder %s22, 1
      %p137 = por %p135, %p136
      %p139 = scmp.ne.s32.totalorder %s122, %s138
      %p140 = scmp.eq.s32.totalorder %s22, 0
      %p141 = por %p139, %p140
      %p142 = scmp.le.s32.totalorder 1, %s16
      %p143 = scmp.lt.s32.totalorder %s16, 3
      %p144 = pnand %p142, %p143
      %p145 = pneg %p144
      // Predicated region
      $region9: #{tpu_custom_call.1} parent=5 // pred_check
        _
      $region10: #{tpu_custom_call.1} parent=5 // pred_check_branch
        %147 = sbr.rel (%p144) target = $region12
      $region11: #{tpu_custom_call.1} parent=5 // pred_region
        %s148 = ssub.s32 %s16, 1
        // Predicated region
        $region13: #{tpu_custom_call.1} parent=11 // pred_check
          %p149 = pneg %p54
        $region14: #{tpu_custom_call.1} parent=11 // pred_check_branch
          %151 = sbr.rel (%p149) target = $region16
        $region15: #{tpu_custom_call.1} parent=11 // pred_region
          %s152 = smul.u32 2, %s25
          %s154 = ssub.s32 1024, 1024
          %155 = vsyncadd [#allocation3], %s154
          %s156 = smul.addr %s152, 4
          %s157 = smul.addr %s156, 128
          %s158 = scalar_lea.hbm %s0, %s157
          %s159 = sshll.u32 [#allocation2], 4
          %s160 = int_to_ptr.vmem [resolvable:$true] %s159
          %165 = dma.hbm_to_vmem [thread:$0]  %s158, 1024, %s160, [#allocation3], 512, 512, 32
        $region16: #{tpu_custom_call.1} parent=11 // pred_fallthru
          _
      $region12: #{tpu_custom_call.1} parent=5 // pred_fallthru
        _
      %p166 = scmp.lt.s32.totalorder %s16, 2
      // Predicated region
      $region17: #{tpu_custom_call.1} parent=5 // pred_check
        %p167 = pneg %p166
      $region18: #{tpu_custom_call.1} parent=5 // pred_check_branch
        %169 = sbr.rel (%p167) target = $region20
      $region19: #{tpu_custom_call.1} parent=5 // pred_region
        // Predicated region
        $region21: #{tpu_custom_call.1} parent=19 // pred_check
          %p170 = pneg %p74
        $region22: #{tpu_custom_call.1} parent=19 // pred_check_branch
          %172 = sbr.rel (%p170) target = $region24
        $region23: #{tpu_custom_call.1} parent=19 // pred_region
          %s173 = sand.u32 %s16, 1
          %s174 = scalar_lea.sflag [#allocation6], %s173
          %s175 = sand.u32 %s64, 1
          %s176 = smul.addr %s175, 2048
          %s177 = scalar_lea.vmem [#allocation5], %s176
          %s178 = smul.u32 4, %s24
          %s180 = ssub.s32 32768, 32768
          %181 = vsyncadd %s174, %s180
          %s182 = smul.addr %s178, 128
          %s183 = scalar_lea.hbm %s1, %s182
          %s184 = sshll.u32 %s177, 4
          %s185 = int_to_ptr.vmem [resolvable:$true] %s184
          %190 = dma.hbm_to_vmem [thread:$0]  %s183, 32768, %s185, %s174, 1024, 512, 32
        $region24: #{tpu_custom_call.1} parent=19 // pred_fallthru
          _
        // Predicated region
        $region25: #{tpu_custom_call.1} parent=19 // pred_check
          %p191 = pneg %p100
        $region26: #{tpu_custom_call.1} parent=19 // pred_check_branch
          %193 = sbr.rel (%p191) target = $region28
        $region27: #{tpu_custom_call.1} parent=19 // pred_region
          %s194 = sand.u32 %s16, 1
          %s195 = scalar_lea.sflag [#allocation6], %s194
          %s196 = sand.u32 %s90, 1
          %s197 = smul.addr %s196, 4
          %s198 = scalar_lea.vmem [#allocation7], %s197
          %s199 = smul.u32 4, %s24
          %s201 = ssub.s32 64, 64
          %202 = vsyncadd %s195, %s201
          %s203 = smul.addr %s199, 16
          %s204 = scalar_lea.hbm %s2, %s203
          %s206 = sshll.u32 %s198, 4
          %s207 = int_to_ptr.vmem [resolvable:$true] %s206
          %209 = dma.hbm_to_vmem [thread:$0]  %s204, 64, %s207, %s195
        $region28: #{tpu_custom_call.1} parent=19 // pred_fallthru
          _
      $region20: #{tpu_custom_call.1} parent=5 // pred_fallthru
        _
      %p210 = scmp.le.s32.totalorder 1, %s16
      %p211 = scmp.lt.s32.totalorder %s16, 3
      %p212 = pnand %p210, %p211
      %p213 = pneg %p212
      // Predicated region
      $region29: #{tpu_custom_call.1} parent=5 // pred_check
        _
      $region30: #{tpu_custom_call.1} parent=5 // pred_check_branch
        %215 = sbr.rel (%p212) target = $region32
      $region31: #{tpu_custom_call.1} parent=5 // pred_region
        %s216 = ssub.s32 %s16, 1
        // Predicated region
        $region33: #{tpu_custom_call.1} parent=31 // pred_check
          %p217 = pneg %p54
        $region34: #{tpu_custom_call.1} parent=31 // pred_check_branch
          %219 = sbr.rel (%p217) target = $region36
        $region35: #{tpu_custom_call.1} parent=31 // pred_region
          %220 = dma.done [#allocation3], 1024
        $region36: #{tpu_custom_call.1} parent=31 // pred_fallthru
          _
        %s221 = sand.u32 %s21, 1
        %s222 = scalar_lea.sflag [#allocation6], %s221
        %s223 = sand.u32 %s67, 1
        %s224 = smul.addr %s223, 2048
        %s225 = scalar_lea.vmem [#allocation5], %s224
        // Predicated region
        $region37: #{tpu_custom_call.1} parent=31 // pred_check
          %p226 = pneg %p80
        $region38: #{tpu_custom_call.1} parent=31 // pred_check_branch
          %228 = sbr.rel (%p226) target = $region40
        $region39: #{tpu_custom_call.1} parent=31 // pred_region
          %229 = dma.done %s222, 32768
        $region40: #{tpu_custom_call.1} parent=31 // pred_fallthru
          _
        %s230 = sand.u32 %s21, 1
        %s231 = scalar_lea.sflag [#allocation6], %s230
        %s232 = sand.u32 %s93, 1
        %s233 = smul.addr %s232, 4
        %s234 = scalar_lea.vmem [#allocation7], %s233
        // Predicated region
        $region41: #{tpu_custom_call.1} parent=31 // pred_check
          %p235 = pneg %p106
        $region42: #{tpu_custom_call.1} parent=31 // pred_check_branch
          %237 = sbr.rel (%p235) target = $region44
        $region43: #{tpu_custom_call.1} parent=31 // pred_region
          %238 = dma.done %s231, 64
        $region44: #{tpu_custom_call.1} parent=31 // pred_fallthru
          _
        %p239 = pneg %p54
        %p240 = pneg %p51
        %s241 = sand.u32 %s21, 1
        %s242 = scalar_lea.sflag [#allocation6], %s241
        %s243 = sand.u32 %s67, 1
        %s244 = smul.addr %s243, 2048
        %s245 = scalar_lea.vmem [#allocation5], %s244
        %p246 = pneg %p80
        %p247 = pneg %p77
        %s248 = sand.u32 %s21, 1
        %s249 = scalar_lea.sflag [#allocation6], %s248
        %s250 = sand.u32 %s93, 1
        %s251 = smul.addr %s250, 4
        %s252 = scalar_lea.vmem [#allocation7], %s251
        %p253 = pneg %p106
        %p254 = pneg %p103
        %p255 = pneg %p134
        %p256 = pneg %p131
        %s257 = sand.u32 %s121, 1
        %s258 = scalar_lea.sflag [#allocation4], %s257
        %s259 = sand.u32 %s121, 1
        %s260 = smul.addr %s259, 64
        %s261 = scalar_lea.vmem [#allocation8], %s260
        %s262 = smul.u32 2, %s25
        %s263 = smul.u32 4, %s26
        %s264 = smul.u32 4, %s26
        %s265 = smul.u32 2, %s25
        %s266 = smul.u32 4, %s26
        %v267 = vld [vmem:[#allocation2] sm:$0xff]
        %v268 = vld [vmem:[#allocation2 + $0x8] sm:$0xff]
        %v269 = vld [vmem:[#allocation2 + $0x10] sm:$0xff]
        %v270 = vld [vmem:[#allocation2 + $0x18] sm:$0xff]
        %v271 = vld [vmem:[#allocation2 + $0x20] sm:$0xff]
        %v272 = vld [vmem:[#allocation2 + $0x28] sm:$0xff]
        %v273 = vld [vmem:[#allocation2 + $0x30] sm:$0xff]
        %v274 = vld [vmem:[#allocation2 + $0x38] sm:$0xff]
        %v275 = vld [vmem:[%s225] sm:$0xff]
        %v276 = vld [vmem:[%s225 + $0x8] sm:$0xff]
        %v277 = vld [vmem:[%s225 + $0x10] sm:$0xff]
        %v278 = vld [vmem:[%s225 + $0x18] sm:$0xff]
        %v279 = vld [vmem:[%s225 + $0x20] sm:$0xff]
        %v280 = vld [vmem:[%s225 + $0x28] sm:$0xff]
        %v281 = vld [vmem:[%s225 + $0x30] sm:$0xff]
        %v282 = vld [vmem:[%s225 + $0x38] sm:$0xff]
        %v283 = vld [vmem:[%s225 + $0x40] sm:$0xff]
        %v284 = vld [vmem:[%s225 + $0x48] sm:$0xff]
        %v285 = vld [vmem:[%s225 + $0x50] sm:$0xff]
        %v286 = vld [vmem:[%s225 + $0x58] sm:$0xff]
        %v287 = vld [vmem:[%s225 + $0x60] sm:$0xff]
        %v288 = vld [vmem:[%s225 + $0x68] sm:$0xff]
        %v289 = vld [vmem:[%s225 + $0x70] sm:$0xff]
        %v290 = vld [vmem:[%s225 + $0x78] sm:$0xff]
        %v291 = vld [vmem:[%s225 + $0x80] sm:$0xff]
        %v292 = vld [vmem:[%s225 + $0x88] sm:$0xff]
        %v293 = vld [vmem:[%s225 + $0x90] sm:$0xff]
        %v294 = vld [vmem:[%s225 + $0x98] sm:$0xff]
        %v295 = vld [vmem:[%s225 + $0xa0] sm:$0xff]
        %v296 = vld [vmem:[%s225 + $0xa8] sm:$0xff]
        %v297 = vld [vmem:[%s225 + $0xb0] sm:$0xff]
        %v298 = vld [vmem:[%s225 + $0xb8] sm:$0xff]
        %v299 = vld [vmem:[%s225 + $0xc0] sm:$0xff]
        %v300 = vld [vmem:[%s225 + $0xc8] sm:$0xff]
        %v301 = vld [vmem:[%s225 + $0xd0] sm:$0xff]
        %v302 = vld [vmem:[%s225 + $0xd8] sm:$0xff]
        %v303 = vld [vmem:[%s225 + $0xe0] sm:$0xff]
        %v304 = vld [vmem:[%s225 + $0xe8] sm:$0xff]
        %v305 = vld [vmem:[%s225 + $0xf0] sm:$0xff]
        %v306 = vld [vmem:[%s225 + $0xf8] sm:$0xff]
        %v307 = vld [vmem:[%s225 + $0x100] sm:$0xff]
        %v308 = vld [vmem:[%s225 + $0x108] sm:$0xff]
        %v309 = vld [vmem:[%s225 + $0x110] sm:$0xff]
        %v310 = vld [vmem:[%s225 + $0x118] sm:$0xff]
        %v311 = vld [vmem:[%s225 + $0x120] sm:$0xff]
        %v312 = vld [vmem:[%s225 + $0x128] sm:$0xff]
        %v313 = vld [vmem:[%s225 + $0x130] sm:$0xff]
        %v314 = vld [vmem:[%s225 + $0x138] sm:$0xff]
        %v315 = vld [vmem:[%s225 + $0x140] sm:$0xff]
        %v316 = vld [vmem:[%s225 + $0x148] sm:$0xff]
        %v317 = vld [vmem:[%s225 + $0x150] sm:$0xff]
        %v318 = vld [vmem:[%s225 + $0x158] sm:$0xff]
        %v319 = vld [vmem:[%s225 + $0x160] sm:$0xff]
        %v320 = vld [vmem:[%s225 + $0x168] sm:$0xff]
        %v321 = vld [vmem:[%s225 + $0x170] sm:$0xff]
        %v322 = vld [vmem:[%s225 + $0x178] sm:$0xff]
        %v323 = vld [vmem:[%s225 + $0x180] sm:$0xff]
        %v324 = vld [vmem:[%s225 + $0x188] sm:$0xff]
        %v325 = vld [vmem:[%s225 + $0x190] sm:$0xff]
        %v326 = vld [vmem:[%s225 + $0x198] sm:$0xff]
        %v327 = vld [vmem:[%s225 + $0x1a0] sm:$0xff]
        %v328 = vld [vmem:[%s225 + $0x1a8] sm:$0xff]
        %v329 = vld [vmem:[%s225 + $0x1b0] sm:$0xff]
        %v330 = vld [vmem:[%s225 + $0x1b8] sm:$0xff]
        %v331 = vld [vmem:[%s225 + $0x1c0] sm:$0xff]
        %v332 = vld [vmem:[%s225 + $0x1c8] sm:$0xff]
        %v333 = vld [vmem:[%s225 + $0x1d0] sm:$0xff]
        %v334 = vld [vmem:[%s225 + $0x1d8] sm:$0xff]
        %v335 = vld [vmem:[%s225 + $0x1e0] sm:$0xff]
        %v336 = vld [vmem:[%s225 + $0x1e8] sm:$0xff]
        %v337 = vld [vmem:[%s225 + $0x1f0] sm:$0xff]
        %v338 = vld [vmem:[%s225 + $0x1f8] sm:$0xff]
        %v339 = vld [vmem:[%s225 + $0x200] sm:$0xff]
        %v340 = vld [vmem:[%s225 + $0x208] sm:$0xff]
        %v341 = vld [vmem:[%s225 + $0x210] sm:$0xff]
        %v342 = vld [vmem:[%s225 + $0x218] sm:$0xff]
        %v343 = vld [vmem:[%s225 + $0x220] sm:$0xff]
        %v344 = vld [vmem:[%s225 + $0x228] sm:$0xff]
        %v345 = vld [vmem:[%s225 + $0x230] sm:$0xff]
        %v346 = vld [vmem:[%s225 + $0x238] sm:$0xff]
        %v347 = vld [vmem:[%s225 + $0x240] sm:$0xff]
        %v348 = vld [vmem:[%s225 + $0x248] sm:$0xff]
        %v349 = vld [vmem:[%s225 + $0x250] sm:$0xff]
        %v350 = vld [vmem:[%s225 + $0x258] sm:$0xff]
        %v351 = vld [vmem:[%s225 + $0x260] sm:$0xff]
        %v352 = vld [vmem:[%s225 + $0x268] sm:$0xff]
        %v353 = vld [vmem:[%s225 + $0x270] sm:$0xff]
        %v354 = vld [vmem:[%s225 + $0x278] sm:$0xff]
        %v355 = vld [vmem:[%s225 + $0x280] sm:$0xff]
        %v356 = vld [vmem:[%s225 + $0x288] sm:$0xff]
        %v357 = vld [vmem:[%s225 + $0x290] sm:$0xff]
        %v358 = vld [vmem:[%s225 + $0x298] sm:$0xff]
        %v359 = vld [vmem:[%s225 + $0x2a0] sm:$0xff]
        %v360 = vld [vmem:[%s225 + $0x2a8] sm:$0xff]
        %v361 = vld [vmem:[%s225 + $0x2b0] sm:$0xff]
        %v362 = vld [vmem:[%s225 + $0x2b8] sm:$0xff]
        %v363 = vld [vmem:[%s225 + $0x2c0] sm:$0xff]
        %v364 = vld [vmem:[%s225 + $0x2c8] sm:$0xff]
        %v365 = vld [vmem:[%s225 + $0x2d0] sm:$0xff]
        %v366 = vld [vmem:[%s225 + $0x2d8] sm:$0xff]
        %v367 = vld [vmem:[%s225 + $0x2e0] sm:$0xff]
        %v368 = vld [vmem:[%s225 + $0x2e8] sm:$0xff]
        %v369 = vld [vmem:[%s225 + $0x2f0] sm:$0xff]
        %v370 = vld [vmem:[%s225 + $0x2f8] sm:$0xff]
        %v371 = vld [vmem:[%s225 + $0x300] sm:$0xff]
        %v372 = vld [vmem:[%s225 + $0x308] sm:$0xff]
        %v373 = vld [vmem:[%s225 + $0x310] sm:$0xff]
        %v374 = vld [vmem:[%s225 + $0x318] sm:$0xff]
        %v375 = vld [vmem:[%s225 + $0x320] sm:$0xff]
        %v376 = vld [vmem:[%s225 + $0x328] sm:$0xff]
        %v377 = vld [vmem:[%s225 + $0x330] sm:$0xff]
        %v378 = vld [vmem:[%s225 + $0x338] sm:$0xff]
        %v379 = vld [vmem:[%s225 + $0x340] sm:$0xff]
        %v380 = vld [vmem:[%s225 + $0x348] sm:$0xff]
        %v381 = vld [vmem:[%s225 + $0x350] sm:$0xff]
        %v382 = vld [vmem:[%s225 + $0x358] sm:$0xff]
        %v383 = vld [vmem:[%s225 + $0x360] sm:$0xff]
        %v384 = vld [vmem:[%s225 + $0x368] sm:$0xff]
        %v385 = vld [vmem:[%s225 + $0x370] sm:$0xff]
        %v386 = vld [vmem:[%s225 + $0x378] sm:$0xff]
        %v387 = vld [vmem:[%s225 + $0x380] sm:$0xff]
        %v388 = vld [vmem:[%s225 + $0x388] sm:$0xff]
        %v389 = vld [vmem:[%s225 + $0x390] sm:$0xff]
        %v390 = vld [vmem:[%s225 + $0x398] sm:$0xff]
        %v391 = vld [vmem:[%s225 + $0x3a0] sm:$0xff]
        %v392 = vld [vmem:[%s225 + $0x3a8] sm:$0xff]
        %v393 = vld [vmem:[%s225 + $0x3b0] sm:$0xff]
        %v394 = vld [vmem:[%s225 + $0x3b8] sm:$0xff]
        %v395 = vld [vmem:[%s225 + $0x3c0] sm:$0xff]
        %v396 = vld [vmem:[%s225 + $0x3c8] sm:$0xff]
        %v397 = vld [vmem:[%s225 + $0x3d0] sm:$0xff]
        %v398 = vld [vmem:[%s225 + $0x3d8] sm:$0xff]
        %v399 = vld [vmem:[%s225 + $0x3e0] sm:$0xff]
        %v400 = vld [vmem:[%s225 + $0x3e8] sm:$0xff]
        %v401 = vld [vmem:[%s225 + $0x3f0] sm:$0xff]
        %v402 = vld [vmem:[%s225 + $0x3f8] sm:$0xff]
        %v403 = vld [vmem:[%s225 + $0x400] sm:$0xff]
        %v404 = vld [vmem:[%s225 + $0x408] sm:$0xff]
        %v405 = vld [vmem:[%s225 + $0x410] sm:$0xff]
        %v406 = vld [vmem:[%s225 + $0x418] sm:$0xff]
        %v407 = vld [vmem:[%s225 + $0x420] sm:$0xff]
        %v408 = vld [vmem:[%s225 + $0x428] sm:$0xff]
        %v409 = vld [vmem:[%s225 + $0x430] sm:$0xff]
        %v410 = vld [vmem:[%s225 + $0x438] sm:$0xff]
        %v411 = vld [vmem:[%s225 + $0x440] sm:$0xff]
        %v412 = vld [vmem:[%s225 + $0x448] sm:$0xff]
        %v413 = vld [vmem:[%s225 + $0x450] sm:$0xff]
        %v414 = vld [vmem:[%s225 + $0x458] sm:$0xff]
        %v415 = vld [vmem:[%s225 + $0x460] sm:$0xff]
        %v416 = vld [vmem:[%s225 + $0x468] sm:$0xff]
        %v417 = vld [vmem:[%s225 + $0x470] sm:$0xff]
        %v418 = vld [vmem:[%s225 + $0x478] sm:$0xff]
        %v419 = vld [vmem:[%s225 + $0x480] sm:$0xff]
        %v420 = vld [vmem:[%s225 + $0x488] sm:$0xff]
        %v421 = vld [vmem:[%s225 + $0x490] sm:$0xff]
        %v422 = vld [vmem:[%s225 + $0x498] sm:$0xff]
        %v423 = vld [vmem:[%s225 + $0x4a0] sm:$0xff]
        %v424 = vld [vmem:[%s225 + $0x4a8] sm:$0xff]
        %v425 = vld [vmem:[%s225 + $0x4b0] sm:$0xff]
        %v426 = vld [vmem:[%s225 + $0x4b8] sm:$0xff]
        %v427 = vld [vmem:[%s225 + $0x4c0] sm:$0xff]
        %v428 = vld [vmem:[%s225 + $0x4c8] sm:$0xff]
        %v429 = vld [vmem:[%s225 + $0x4d0] sm:$0xff]
        %v430 = vld [vmem:[%s225 + $0x4d8] sm:$0xff]
        %v431 = vld [vmem:[%s225 + $0x4e0] sm:$0xff]
        %v432 = vld [vmem:[%s225 + $0x4e8] sm:$0xff]
        %v433 = vld [vmem:[%s225 + $0x4f0] sm:$0xff]
        %v434 = vld [vmem:[%s225 + $0x4f8] sm:$0xff]
        %v435 = vld [vmem:[%s225 + $0x500] sm:$0xff]
        %v436 = vld [vmem:[%s225 + $0x508] sm:$0xff]
        %v437 = vld [vmem:[%s225 + $0x510] sm:$0xff]
        %v438 = vld [vmem:[%s225 + $0x518] sm:$0xff]
        %v439 = vld [vmem:[%s225 + $0x520] sm:$0xff]
        %v440 = vld [vmem:[%s225 + $0x528] sm:$0xff]
        %v441 = vld [vmem:[%s225 + $0x530] sm:$0xff]
        %v442 = vld [vmem:[%s225 + $0x538] sm:$0xff]
        %v443 = vld [vmem:[%s225 + $0x540] sm:$0xff]
        %v444 = vld [vmem:[%s225 + $0x548] sm:$0xff]
        %v445 = vld [vmem:[%s225 + $0x550] sm:$0xff]
        %v446 = vld [vmem:[%s225 + $0x558] sm:$0xff]
        %v447 = vld [vmem:[%s225 + $0x560] sm:$0xff]
        %v448 = vld [vmem:[%s225 + $0x568] sm:$0xff]
        %v449 = vld [vmem:[%s225 + $0x570] sm:$0xff]
        %v450 = vld [vmem:[%s225 + $0x578] sm:$0xff]
        %v451 = vld [vmem:[%s225 + $0x580] sm:$0xff]
        %v452 = vld [vmem:[%s225 + $0x588] sm:$0xff]
        %v453 = vld [vmem:[%s225 + $0x590] sm:$0xff]
        %v454 = vld [vmem:[%s225 + $0x598] sm:$0xff]
        %v455 = vld [vmem:[%s225 + $0x5a0] sm:$0xff]
        %v456 = vld [vmem:[%s225 + $0x5a8] sm:$0xff]
        %v457 = vld [vmem:[%s225 + $0x5b0] sm:$0xff]
        %v458 = vld [vmem:[%s225 + $0x5b8] sm:$0xff]
        %v459 = vld [vmem:[%s225 + $0x5c0] sm:$0xff]
        %v460 = vld [vmem:[%s225 + $0x5c8] sm:$0xff]
        %v461 = vld [vmem:[%s225 + $0x5d0] sm:$0xff]
        %v462 = vld [vmem:[%s225 + $0x5d8] sm:$0xff]
        %v463 = vld [vmem:[%s225 + $0x5e0] sm:$0xff]
        %v464 = vld [vmem:[%s225 + $0x5e8] sm:$0xff]
        %v465 = vld [vmem:[%s225 + $0x5f0] sm:$0xff]
        %v466 = vld [vmem:[%s225 + $0x5f8] sm:$0xff]
        %v467 = vld [vmem:[%s225 + $0x600] sm:$0xff]
        %v468 = vld [vmem:[%s225 + $0x608] sm:$0xff]
        %v469 = vld [vmem:[%s225 + $0x610] sm:$0xff]
        %v470 = vld [vmem:[%s225 + $0x618] sm:$0xff]
        %v471 = vld [vmem:[%s225 + $0x620] sm:$0xff]
        %v472 = vld [vmem:[%s225 + $0x628] sm:$0xff]
        %v473 = vld [vmem:[%s225 + $0x630] sm:$0xff]
        %v474 = vld [vmem:[%s225 + $0x638] sm:$0xff]
        %v475 = vld [vmem:[%s225 + $0x640] sm:$0xff]
        %v476 = vld [vmem:[%s225 + $0x648] sm:$0xff]
        %v477 = vld [vmem:[%s225 + $0x650] sm:$0xff]
        %v478 = vld [vmem:[%s225 + $0x658] sm:$0xff]
        %v479 = vld [vmem:[%s225 + $0x660] sm:$0xff]
        %v480 = vld [vmem:[%s225 + $0x668] sm:$0xff]
        %v481 = vld [vmem:[%s225 + $0x670] sm:$0xff]
        %v482 = vld [vmem:[%s225 + $0x678] sm:$0xff]
        %v483 = vld [vmem:[%s225 + $0x680] sm:$0xff]
        %v484 = vld [vmem:[%s225 + $0x688] sm:$0xff]
        %v485 = vld [vmem:[%s225 + $0x690] sm:$0xff]
        %v486 = vld [vmem:[%s225 + $0x698] sm:$0xff]
        %v487 = vld [vmem:[%s225 + $0x6a0] sm:$0xff]
        %v488 = vld [vmem:[%s225 + $0x6a8] sm:$0xff]
        %v489 = vld [vmem:[%s225 + $0x6b0] sm:$0xff]
        %v490 = vld [vmem:[%s225 + $0x6b8] sm:$0xff]
        %v491 = vld [vmem:[%s225 + $0x6c0] sm:$0xff]
        %v492 = vld [vmem:[%s225 + $0x6c8] sm:$0xff]
        %v493 = vld [vmem:[%s225 + $0x6d0] sm:$0xff]
        %v494 = vld [vmem:[%s225 + $0x6d8] sm:$0xff]
        %v495 = vld [vmem:[%s225 + $0x6e0] sm:$0xff]
        %v496 = vld [vmem:[%s225 + $0x6e8] sm:$0xff]
        %v497 = vld [vmem:[%s225 + $0x6f0] sm:$0xff]
        %v498 = vld [vmem:[%s225 + $0x6f8] sm:$0xff]
        %v499 = vld [vmem:[%s225 + $0x700] sm:$0xff]
        %v500 = vld [vmem:[%s225 + $0x708] sm:$0xff]
        %v501 = vld [vmem:[%s225 + $0x710] sm:$0xff]
        %v502 = vld [vmem:[%s225 + $0x718] sm:$0xff]
        %v503 = vld [vmem:[%s225 + $0x720] sm:$0xff]
        %v504 = vld [vmem:[%s225 + $0x728] sm:$0xff]
        %v505 = vld [vmem:[%s225 + $0x730] sm:$0xff]
        %v506 = vld [vmem:[%s225 + $0x738] sm:$0xff]
        %v507 = vld [vmem:[%s225 + $0x740] sm:$0xff]
        %v508 = vld [vmem:[%s225 + $0x748] sm:$0xff]
        %v509 = vld [vmem:[%s225 + $0x750] sm:$0xff]
        %v510 = vld [vmem:[%s225 + $0x758] sm:$0xff]
        %v511 = vld [vmem:[%s225 + $0x760] sm:$0xff]
        %v512 = vld [vmem:[%s225 + $0x768] sm:$0xff]
        %v513 = vld [vmem:[%s225 + $0x770] sm:$0xff]
        %v514 = vld [vmem:[%s225 + $0x778] sm:$0xff]
        %v515 = vld [vmem:[%s225 + $0x780] sm:$0xff]
        %v516 = vld [vmem:[%s225 + $0x788] sm:$0xff]
        %v517 = vld [vmem:[%s225 + $0x790] sm:$0xff]
        %v518 = vld [vmem:[%s225 + $0x798] sm:$0xff]
        %v519 = vld [vmem:[%s225 + $0x7a0] sm:$0xff]
        %v520 = vld [vmem:[%s225 + $0x7a8] sm:$0xff]
        %v521 = vld [vmem:[%s225 + $0x7b0] sm:$0xff]
        %v522 = vld [vmem:[%s225 + $0x7b8] sm:$0xff]
        %v523 = vld [vmem:[%s225 + $0x7c0] sm:$0xff]
        %v524 = vld [vmem:[%s225 + $0x7c8] sm:$0xff]
        %v525 = vld [vmem:[%s225 + $0x7d0] sm:$0xff]
        %v526 = vld [vmem:[%s225 + $0x7d8] sm:$0xff]
        %v527 = vld [vmem:[%s225 + $0x7e0] sm:$0xff]
        %v528 = vld [vmem:[%s225 + $0x7e8] sm:$0xff]
        %v529 = vld [vmem:[%s225 + $0x7f0] sm:$0xff]
        %v530 = vld [vmem:[%s225 + $0x7f8] sm:$0xff]
        %v531 = vld [vmem:[%s234] sm:$0xf]
        %v533 = vlaneseq
        %v534 = vshrl.u32 %v533, 7
        %v535 = vsub.s32 0, %v534
        %v536 = vrot.slane %v531, %v535
        %v537 = vlaneseq
        %v538 = vshrl.u32 %v537, 7
        %v539 = vsub.s32 1, %v538
        %v540 = vrot.slane %v531, %v539
        %v541 = vlaneseq
        %v542 = vshrl.u32 %v541, 7
        %v543 = vsub.s32 2, %v542
        %v544 = vrot.slane %v531, %v543
        %v545 = vlaneseq
        %v546 = vshrl.u32 %v545, 7
        %v547 = vsub.s32 3, %v546
        %v548 = vrot.slane %v531, %v547
        %553 = vmatprep.subr.mxu0 %v336
        %554 = vmatpush1.msra.mxu0 %v335
        %555 = vmatprep.subr.mxu0 %v332
        %556 = vmatpush1.msra.mxu0 %v331
        %557 = vmatprep.subr.mxu0 %v328
        %558 = vmatpush1.msra.mxu0 %v327
        %559 = vmatprep.subr.mxu0 %v324
        %560 = vmatpush1.msra.mxu0 %v323
        %561 = vmatprep.subr.mxu0 %v320
        %562 = vmatpush1.msra.mxu0 %v319
        %563 = vmatprep.subr.mxu0 %v316
        %564 = vmatpush1.msra.mxu0 %v315
        %565 = vmatprep.subr.mxu0 %v312
        %566 = vmatpush1.msra.mxu0 %v311
        %567 = vmatprep.subr.mxu0 %v308
        %568 = vmatpush1.msra.mxu0 %v307
        %569 = vmatprep.subr.mxu0 %v304
        %570 = vmatpush1.msra.mxu0 %v303
        %571 = vmatprep.subr.mxu0 %v300
        %572 = vmatpush1.msra.mxu0 %v299
        %573 = vmatprep.subr.mxu0 %v296
        %574 = vmatpush1.msra.mxu0 %v295
        %575 = vmatprep.subr.mxu0 %v292
        %576 = vmatpush1.msra.mxu0 %v291
        %577 = vmatprep.subr.mxu0 %v288
        %578 = vmatpush1.msra.mxu0 %v287
        %579 = vmatprep.subr.mxu0 %v284
        %580 = vmatpush1.msra.mxu0 %v283
        %581 = vmatprep.subr.mxu0 %v280
        %582 = vmatpush1.msra.mxu0 %v279
        %583 = vmatprep.subr.mxu0 %v276
        %584 = vmatpush1.msra.mxu0 %v275
        %585 = vmatprep.subr.mxu0 %v400
        %586 = vmatpush2.msra.mxu0 %v399
        %587 = vmatprep.subr.mxu0 %v396
        %588 = vmatpush2.msra.mxu0 %v395
        %589 = vmatprep.subr.mxu0 %v392
        %590 = vmatpush2.msra.mxu0 %v391
        %591 = vmatprep.subr.mxu0 %v388
        %592 = vmatpush2.msra.mxu0 %v387
        %593 = vmatprep.subr.mxu0 %v384
        %594 = vmatpush2.msra.mxu0 %v383
        %595 = vmatprep.subr.mxu0 %v380
        %596 = vmatpush2.msra.mxu0 %v379
        %597 = vmatprep.subr.mxu0 %v376
        %598 = vmatpush2.msra.mxu0 %v375
        %599 = vmatprep.subr.mxu0 %v372
        %600 = vmatpush2.msra.mxu0 %v371
        %601 = vmatprep.subr.mxu0 %v368
        %602 = vmatpush2.msra.mxu0 %v367
        %603 = vmatprep.subr.mxu0 %v364
        %604 = vmatpush2.msra.mxu0 %v363
        %605 = vmatprep.subr.mxu0 %v360
        %606 = vmatpush2.msra.mxu0 %v359
        %607 = vmatprep.subr.mxu0 %v356
        %608 = vmatpush2.msra.mxu0 %v355
        %609 = vmatprep.subr.mxu0 %v352
        %610 = vmatpush2.msra.mxu0 %v351
        %611 = vmatprep.subr.mxu0 %v348
        %612 = vmatpush2.msra.mxu0 %v347
        %613 = vmatprep.subr.mxu0 %v344
        %614 = vmatpush2.msra.mxu0 %v343
        %615 = vmatprep.subr.mxu0 %v340
        %616 = vmatpush2.msra.mxu0 %v339
        %617 = vmatprep.mubr.f32.mxu0 %v268
        %618 = vmatmul.mubr.f32.gmra.mxu0 %v267
        %v619 = vpop.f32.mrf.mxu0
        %v620 = vadd.f32 %v536, %v619
        %v621 = vpop.f32.mrf.mxu0
        %v622 = vadd.f32 %v540, %v621
        %623 = vmatprep.mubr.f32.mxu0 %v272
        %624 = vmatmul.mubr.f32.gmra.mxu0 %v271
        %v625 = vpop.f32.mrf.mxu0
        %v626 = vadd.f32 %v536, %v625
        %v627 = vpop.f32.mrf.mxu0
        %v628 = vadd.f32 %v540, %v627
        %629 = vdwg.mxu0
        %630 = vmatprep.subr.mxu0 %v464
        %631 = vmatpush1.msra.mxu0 %v463
        %632 = vmatprep.subr.mxu0 %v460
        %633 = vmatpush1.msra.mxu0 %v459
        %634 = vmatprep.subr.mxu0 %v456
        %635 = vmatpush1.msra.mxu0 %v455
        %636 = vmatprep.subr.mxu0 %v452
        %637 = vmatpush1.msra.mxu0 %v451
        %638 = vmatprep.subr.mxu0 %v448
        %639 = vmatpush1.msra.mxu0 %v447
        %640 = vmatprep.subr.mxu0 %v444
        %641 = vmatpush1.msra.mxu0 %v443
        %642 = vmatprep.subr.mxu0 %v440
        %643 = vmatpush1.msra.mxu0 %v439
        %644 = vmatprep.subr.mxu0 %v436
        %645 = vmatpush1.msra.mxu0 %v435
        %646 = vmatprep.subr.mxu0 %v432
        %647 = vmatpush1.msra.mxu0 %v431
        %648 = vmatprep.subr.mxu0 %v428
        %649 = vmatpush1.msra.mxu0 %v427
        %650 = vmatprep.subr.mxu0 %v424
        %651 = vmatpush1.msra.mxu0 %v423
        %652 = vmatprep.subr.mxu0 %v420
        %653 = vmatpush1.msra.mxu0 %v419
        %654 = vmatprep.subr.mxu0 %v416
        %655 = vmatpush1.msra.mxu0 %v415
        %656 = vmatprep.subr.mxu0 %v412
        %657 = vmatpush1.msra.mxu0 %v411
        %658 = vmatprep.subr.mxu0 %v408
        %659 = vmatpush1.msra.mxu0 %v407
        %660 = vmatprep.subr.mxu0 %v404
        %661 = vmatpush1.msra.mxu0 %v403
        %662 = vmatprep.subr.mxu0 %v528
        %663 = vmatpush2.msra.mxu0 %v527
        %664 = vmatprep.subr.mxu0 %v524
        %665 = vmatpush2.msra.mxu0 %v523
        %666 = vmatprep.subr.mxu0 %v520
        %667 = vmatpush2.msra.mxu0 %v519
        %668 = vmatprep.subr.mxu0 %v516
        %669 = vmatpush2.msra.mxu0 %v515
        %670 = vmatprep.subr.mxu0 %v512
        %671 = vmatpush2.msra.mxu0 %v511
        %672 = vmatprep.subr.mxu0 %v508
        %673 = vmatpush2.msra.mxu0 %v507
        %674 = vmatprep.subr.mxu0 %v504
        %675 = vmatpush2.msra.mxu0 %v503
        %676 = vmatprep.subr.mxu0 %v500
        %677 = vmatpush2.msra.mxu0 %v499
        %678 = vmatprep.subr.mxu0 %v496
        %679 = vmatpush2.msra.mxu0 %v495
        %680 = vmatprep.subr.mxu0 %v492
        %681 = vmatpush2.msra.mxu0 %v491
        %682 = vmatprep.subr.mxu0 %v488
        %683 = vmatpush2.msra.mxu0 %v487
        %684 = vmatprep.subr.mxu0 %v484
        %685 = vmatpush2.msra.mxu0 %v483
        %686 = vmatprep.subr.mxu0 %v480
        %687 = vmatpush2.msra.mxu0 %v479
        %688 = vmatprep.subr.mxu0 %v476
        %689 = vmatpush2.msra.mxu0 %v475
        %690 = vmatprep.subr.mxu0 %v472
        %691 = vmatpush2.msra.mxu0 %v471
        %692 = vmatprep.subr.mxu0 %v468
        %693 = vmatpush2.msra.mxu0 %v467
        %694 = vmatprep.mubr.f32.mxu0 %v270
        %695 = vmatmul.mubr.f32.gmra.mxu0 %v269
        %v696 = vpop.f32.mrf.mxu0
        %v697 = vadd.f32 %v620, %v696
        %v698 = vpop.f32.mrf.mxu0
        %v699 = vadd.f32 %v622, %v698
        %700 = vmatprep.mubr.f32.mxu0 %v274
        %701 = vmatmul.mubr.f32.gmra.mxu0 %v273
        %v702 = vpop.f32.mrf.mxu0
        %v703 = vadd.f32 %v626, %v702
        %v704 = vpop.f32.mrf.mxu0
        %v705 = vadd.f32 %v628, %v704
        %706 = vdwg.mxu0
        %707 = vmatprep.subr.mxu0 %v338
        %708 = vmatpush1.msra.mxu0 %v337
        %709 = vmatprep.subr.mxu0 %v334
        %710 = vmatpush1.msra.mxu0 %v333
        %711 = vmatprep.subr.mxu0 %v330
        %712 = vmatpush1.msra.mxu0 %v329
        %713 = vmatprep.subr.mxu0 %v326
        %714 = vmatpush1.msra.mxu0 %v325
        %715 = vmatprep.subr.mxu0 %v322
        %716 = vmatpush1.msra.mxu0 %v321
        %717 = vmatprep.subr.mxu0 %v318
        %718 = vmatpush1.msra.mxu0 %v317
        %719 = vmatprep.subr.mxu0 %v314
        %720 = vmatpush1.msra.mxu0 %v313
        %721 = vmatprep.subr.mxu0 %v310
        %722 = vmatpush1.msra.mxu0 %v309
        %723 = vmatprep.subr.mxu0 %v306
        %724 = vmatpush1.msra.mxu0 %v305
        %725 = vmatprep.subr.mxu0 %v302
        %726 = vmatpush1.msra.mxu0 %v301
        %727 = vmatprep.subr.mxu0 %v298
        %728 = vmatpush1.msra.mxu0 %v297
        %729 = vmatprep.subr.mxu0 %v294
        %730 = vmatpush1.msra.mxu0 %v293
        %731 = vmatprep.subr.mxu0 %v290
        %732 = vmatpush1.msra.mxu0 %v289
        %733 = vmatprep.subr.mxu0 %v286
        %734 = vmatpush1.msra.mxu0 %v285
        %735 = vmatprep.subr.mxu0 %v282
        %736 = vmatpush1.msra.mxu0 %v281
        %737 = vmatprep.subr.mxu0 %v278
        %738 = vmatpush1.msra.mxu0 %v277
        %739 = vmatprep.subr.mxu0 %v402
        %740 = vmatpush2.msra.mxu0 %v401
        %741 = vmatprep.subr.mxu0 %v398
        %742 = vmatpush2.msra.mxu0 %v397
        %743 = vmatprep.subr.mxu0 %v394
        %744 = vmatpush2.msra.mxu0 %v393
        %745 = vmatprep.subr.mxu0 %v390
        %746 = vmatpush2.msra.mxu0 %v389
        %747 = vmatprep.subr.mxu0 %v386
        %748 = vmatpush2.msra.mxu0 %v385
        %749 = vmatprep.subr.mxu0 %v382
        %750 = vmatpush2.msra.mxu0 %v381
        %751 = vmatprep.subr.mxu0 %v378
        %752 = vmatpush2.msra.mxu0 %v377
        %753 = vmatprep.subr.mxu0 %v374
        %754 = vmatpush2.msra.mxu0 %v373
        %755 = vmatprep.subr.mxu0 %v370
        %756 = vmatpush2.msra.mxu0 %v369
        %757 = vmatprep.subr.mxu0 %v366
        %758 = vmatpush2.msra.mxu0 %v365
        %759 = vmatprep.subr.mxu0 %v362
        %760 = vmatpush2.msra.mxu0 %v361
        %761 = vmatprep.subr.mxu0 %v358
        %762 = vmatpush2.msra.mxu0 %v357
        %763 = vmatprep.subr.mxu0 %v354
        %764 = vmatpush2.msra.mxu0 %v353
        %765 = vmatprep.subr.mxu0 %v350
        %766 = vmatpush2.msra.mxu0 %v349
        %767 = vmatprep.subr.mxu0 %v346
        %768 = vmatpush2.msra.mxu0 %v345
        %769 = vmatprep.subr.mxu0 %v342
        %770 = vmatpush2.msra.mxu0 %v341
        %771 = vmatprep.mubr.f32.mxu0 %v268
        %772 = vmatmul.mubr.f32.gmra.mxu0 %v267
        %v773 = vpop.f32.mrf.mxu0
        %v774 = vadd.f32 %v544, %v773
        %v775 = vpop.f32.mrf.mxu0
        %v776 = vadd.f32 %v548, %v775
        %777 = vmatprep.mubr.f32.mxu0 %v272
        %778 = vmatmul.mubr.f32.gmra.mxu0 %v271
        %v779 = vpop.f32.mrf.mxu0
        %v780 = vadd.f32 %v544, %v779
        %v781 = vpop.f32.mrf.mxu0
        %v782 = vadd.f32 %v548, %v781
        %783 = vdwg.mxu0
        %784 = vmatprep.subr.mxu0 %v466
        %785 = vmatpush1.msra.mxu0 %v465
        %786 = vmatprep.subr.mxu0 %v462
        %787 = vmatpush1.msra.mxu0 %v461
        %788 = vmatprep.subr.mxu0 %v458
        %789 = vmatpush1.msra.mxu0 %v457
        %790 = vmatprep.subr.mxu0 %v454
        %791 = vmatpush1.msra.mxu0 %v453
        %792 = vmatprep.subr.mxu0 %v450
        %793 = vmatpush1.msra.mxu0 %v449
        %794 = vmatprep.subr.mxu0 %v446
        %795 = vmatpush1.msra.mxu0 %v445
        %796 = vmatprep.subr.mxu0 %v442
        %797 = vmatpush1.msra.mxu0 %v441
        %798 = vmatprep.subr.mxu0 %v438
        %799 = vmatpush1.msra.mxu0 %v437
        %800 = vmatprep.subr.mxu0 %v434
        %801 = vmatpush1.msra.mxu0 %v433
        %802 = vmatprep.subr.mxu0 %v430
        %803 = vmatpush1.msra.mxu0 %v429
        %804 = vmatprep.subr.mxu0 %v426
        %805 = vmatpush1.msra.mxu0 %v425
        %806 = vmatprep.subr.mxu0 %v422
        %807 = vmatpush1.msra.mxu0 %v421
        %808 = vmatprep.subr.mxu0 %v418
        %809 = vmatpush1.msra.mxu0 %v417
        %810 = vmatprep.subr.mxu0 %v414
        %811 = vmatpush1.msra.mxu0 %v413
        %812 = vmatprep.subr.mxu0 %v410
        %813 = vmatpush1.msra.mxu0 %v409
        %814 = vmatprep.subr.mxu0 %v406
        %815 = vmatpush1.msra.mxu0 %v405
        %816 = vmatprep.subr.mxu0 %v530
        %817 = vmatpush2.msra.mxu0 %v529
        %818 = vmatprep.subr.mxu0 %v526
        %819 = vmatpush2.msra.mxu0 %v525
        %820 = vmatprep.subr.mxu0 %v522
        %821 = vmatpush2.msra.mxu0 %v521
        %822 = vmatprep.subr.mxu0 %v518
        %823 = vmatpush2.msra.mxu0 %v517
        %824 = vmatprep.subr.mxu0 %v514
        %825 = vmatpush2.msra.mxu0 %v513
        %826 = vmatprep.subr.mxu0 %v510
        %827 = vmatpush2.msra.mxu0 %v509
        %828 = vmatprep.subr.mxu0 %v506
        %829 = vmatpush2.msra.mxu0 %v505
        %830 = vmatprep.subr.mxu0 %v502
        %831 = vmatpush2.msra.mxu0 %v501
        %832 = vmatprep.subr.mxu0 %v498
        %833 = vmatpush2.msra.mxu0 %v497
        %834 = vmatprep.subr.mxu0 %v494
        %835 = vmatpush2.msra.mxu0 %v493
        %836 = vmatprep.subr.mxu0 %v490
        %837 = vmatpush2.msra.mxu0 %v489
        %838 = vmatprep.subr.mxu0 %v486
        %839 = vmatpush2.msra.mxu0 %v485
        %840 = vmatprep.subr.mxu0 %v482
        %841 = vmatpush2.msra.mxu0 %v481
        %842 = vmatprep.subr.mxu0 %v478
        %843 = vmatpush2.msra.mxu0 %v477
        %844 = vmatprep.subr.mxu0 %v474
        %845 = vmatpush2.msra.mxu0 %v473
        %846 = vmatprep.subr.mxu0 %v470
        %847 = vmatpush2.msra.mxu0 %v469
        %848 = vmatprep.mubr.f32.mxu0 %v270
        %849 = vmatmul.mubr.f32.gmra.mxu0 %v269
        %v850 = vpop.f32.mrf.mxu0
        %v851 = vadd.f32 %v774, %v850
        %v852 = vpop.f32.mrf.mxu0
        %v853 = vadd.f32 %v776, %v852
        %854 = vmatprep.mubr.f32.mxu0 %v274
        %855 = vmatmul.mubr.f32.gmra.mxu0 %v273
        %v856 = vpop.f32.mrf.mxu0
        %v857 = vadd.f32 %v780, %v856
        %v858 = vpop.f32.mrf.mxu0
        %v859 = vadd.f32 %v782, %v858
        %860 = vdwg.mxu0
        %861 = vst [vmem:[%s261] sm:$0xff] %v697
        %862 = vst [vmem:[%s261 + $0x8] sm:$0xff] %v699
        %863 = vst [vmem:[%s261 + $0x10] sm:$0xff] %v851
        %864 = vst [vmem:[%s261 + $0x18] sm:$0xff] %v853
        %865 = vst [vmem:[%s261 + $0x20] sm:$0xff] %v703
        %866 = vst [vmem:[%s261 + $0x28] sm:$0xff] %v705
        %867 = vst [vmem:[%s261 + $0x30] sm:$0xff] %v857
        %868 = vst [vmem:[%s261 + $0x38] sm:$0xff] %v859
        %s869 = sand.u32 %s121, 1
        %s870 = scalar_lea.sflag [#allocation4], %s869
        %s871 = sand.u32 %s121, 1
        %s872 = smul.addr %s871, 64
        %s873 = scalar_lea.vmem [#allocation8], %s872
        // Predicated region
        $region45: #{tpu_custom_call.1} parent=31 // pred_check
          %p874 = pneg %p131
        $region46: #{tpu_custom_call.1} parent=31 // pred_check_branch
          %876 = sbr.rel (%p874) target = $region48
        $region47: #{tpu_custom_call.1} parent=31 // pred_region
          %s877 = smul.u32 2, %s25
          %s878 = smul.u32 4, %s26
          %s880 = ssub.s32 1024, 1024
          %881 = vsyncadd %s870, %s880
          %s882 = smul.addr %s877, 8
          %s883 = sadd.s32 %s878, %s882
          %s884 = smul.addr %s883, 128
          %s885 = scalar_lea.hbm %s3, %s884
          %s886 = sshll.u32 %s873, 4
          %s887 = int_to_ptr.vmem [resolvable:$true] %s886
          %892 = dma.vmem_to_hbm [thread:$0]  %s887, 1024, %s885, %s870, 512, 1024, 32
        $region48: #{tpu_custom_call.1} parent=31 // pred_fallthru
          _
      $region32: #{tpu_custom_call.1} parent=5 // pred_fallthru
        _
      %p893 = scmp.le.s32.totalorder 2, %s16
      // Predicated region
      $region49: #{tpu_custom_call.1} parent=5 // pred_check
        %p894 = pneg %p893
      $region50: #{tpu_custom_call.1} parent=5 // pred_check_branch
        %896 = sbr.rel (%p894) target = $region52
      $region51: #{tpu_custom_call.1} parent=5 // pred_region
        %s897 = ssub.s32 %s16, 2
        // Predicated region
        $region53: #{tpu_custom_call.1} parent=51 // pred_check
          %p898 = pneg %p137
        $region54: #{tpu_custom_call.1} parent=51 // pred_check_branch
          %900 = sbr.rel (%p898) target = $region56
        $region55: #{tpu_custom_call.1} parent=51 // pred_region
          %s901 = sand.u32 %s122, 1
          %s902 = scalar_lea.sflag [#allocation4], %s901
          %s903 = sand.u32 %s122, 1
          %s904 = smul.addr %s903, 64
          %s905 = scalar_lea.vmem [#allocation8], %s904
          %906 = dma.done %s902, 1024
        $region56: #{tpu_custom_call.1} parent=51 // pred_fallthru
          _
      $region52: #{tpu_custom_call.1} parent=5 // pred_fallthru
        _
    $region6: #{tpu_custom_call.1} parent=1 // loop_footer
      %s20 = sadd.s32 1, %s16
    $region7: #{tpu_custom_call.1} parent=1 // loop_footer_branch
      %15 = sbr.rel target = $region3
    $region8: #{tpu_custom_call.1} parent=1 // loop_exit
      _
    %907 = vsyncpa [#allocation3], 1
    %s908 = scalar_lea.sflag [#allocation3], 1
    %909 = vsyncpa %s908, 1
    %910 = vsyncpa [#allocation6], 1
    %s911 = scalar_lea.sflag [#allocation6], 1
    %912 = vsyncpa %s911, 1
    %913 = vsyncpa [#allocation4], 1
    %s914 = scalar_lea.sflag [#allocation4], 1
    %915 = vsyncpa %s914, 1

</llo_original>
